<compile_context>
chip_gen: v7x
topology: tpu7x:2x2x1
jax: 0.10.0
libtpu: 0.0.40
codegen_flags: <defaults>
</compile_context>

<pallas_src>
import functools

import jax
import jax.numpy as jnp
from jax.experimental import pallas as pl
from jax.experimental.pallas import tpu as pltpu

LANES = 128
SUBLANES = 8


def _dice_bce_kernel(x_ref, t_ref, out_ref, *, n_valid, g_block,
                     tiles_per_split, needs_mask):
    """Accumulates per-lane partial sums of
       [ p*t, p, t, BCE(x, t) ]  with p = sigmoid(x)
    into out_ref[0] (shape (4, 8, 128)), which stays resident across the
    reduction grid axis."""
    c = pl.program_id(0)   # TensorCore split ("parallel")
    i = pl.program_id(1)   # reduction over tiles ("arbitrary")

    @pl.when(i == 0)
    def _init():
        out_ref[...] = jnp.zeros_like(out_ref)

    x = x_ref[...].astype(jnp.float32)   # (g_block, 8, 128)
    t = t_ref[...].astype(jnp.float32)

    # sigmoid + softplus sharing a single exp:
    #   e = exp(-|x|);   sigmoid(x) = (x>=0 ? 1 : e) / (1 + e)
    #   softplus(x)      = max(x, 0) + log1p(e)
    #   BCE(x, t)        = -(t*log p + (1-t)*log(1-p)) = softplus(x) - t*x
    e = jnp.exp(-jnp.abs(x))
    inv = 1.0 / (1.0 + e)
    p = jnp.where(x >= 0, inv, e * inv)
    bce = jnp.maximum(x, 0.0) + jnp.log1p(e) - t * x

    if needs_mask:
        # Global flat element index (int32; fine for < 2**31 elements).
        tile_elems = g_block * SUBLANES * LANES
        start = (c * tiles_per_split + i) * tile_elems
        g = jax.lax.broadcasted_iota(jnp.int32, (g_block, SUBLANES, LANES), 0)
        s = jax.lax.broadcasted_iota(jnp.int32, (g_block, SUBLANES, LANES), 1)
        l = jax.lax.broadcasted_iota(jnp.int32, (g_block, SUBLANES, LANES), 2)
        valid = (start + (g * SUBLANES + s) * LANES + l) < n_valid
        zero = jnp.zeros_like(x)
        t = jnp.where(valid, t, zero)
        p = jnp.where(valid, p, zero)
        bce = jnp.where(valid, bce, zero)

    # Leading-axis reductions: pure vreg-wise VPU adds (no cross-lane work).
    out_ref[0, 0] += jnp.sum(p * t, axis=0)   # intersection partials
    out_ref[0, 1] += jnp.sum(p, axis=0)       # sum(sigmoid(x))
    out_ref[0, 2] += jnp.sum(t, axis=0)       # sum(targets)
    out_ref[0, 3] += jnp.sum(bce, axis=0)     # sum of per-element BCE


def dice_bce_loss(inputs, targets, weight=0.5, smooth=1.0,
                  block_rows=1024, num_splits=2):
    """JAX/Pallas equivalent of DiceBCELoss.forward(inputs, targets, smooth).

    Returns (dice_bce_loss, dice_coefficient) exactly like the PyTorch module.
    `inputs` are logits (pre-sigmoid), any float dtype; `targets` any numeric
    dtype. block_rows must be a multiple of 8.
    """
    n = inputs.size
    x = inputs.reshape(-1)            # keep native dtype (e.g. bf16) for DMA
    t = targets.reshape(-1)

    # Minimal pad so the flat vector reshapes to (groups, 8, 128). At most
    # 8*128-1 elements, only when needed; padded elements are masked in-kernel.
    pad = (-n) % (SUBLANES * LANES)
    if pad:
        x = jnp.pad(x, (0, pad))
        t = jnp.pad(t, (0, pad))
    rows = (n + pad) // LANES                     # multiple of 8
    n_groups = rows // SUBLANES

    g_block = max(1, min(block_rows, rows) // SUBLANES)
    num_tiles = pl.cdiv(n_groups, g_block)
    tiles_per_split = pl.cdiv(num_tiles, num_splits)

    x3 = x.reshape(n_groups, SUBLANES, LANES)     # free (contiguous) reshape
    t3 = t.reshape(n_groups, SUBLANES, LANES)

    # Masking only needed when the last tile is partial / padded, or when the
    # split axis over-provisions tiles (num_tiles not divisible by num_splits).
    needs_mask = (n != n_groups * SUBLANES * LANES) or \
                 (num_splits * tiles_per_split != num_tiles)

    def in_map(c, i):
        # Clamp so over-provisioned tiles re-read the last valid block; their
        # contribution is masked to zero inside the kernel.
        return (jnp.minimum(c * tiles_per_split + i, num_tiles - 1), 0, 0)

    kernel = functools.partial(
        _dice_bce_kernel, n_valid=n, g_block=g_block,
        tiles_per_split=tiles_per_split, needs_mask=needs_mask)

    partial = pl.pallas_call(
        kernel,
        out_shape=jax.ShapeDtypeStruct(
            (num_splits, 4, SUBLANES, LANES), jnp.float32),
        grid_spec=pltpu.PrefetchScalarGridSpec(
            num_scalar_prefetch=0,
            grid=(num_splits, tiles_per_split),
            in_specs=[
                pl.BlockSpec((g_block, SUBLANES, LANES), in_map),
                pl.BlockSpec((g_block, SUBLANES, LANES), in_map),
            ],
            out_specs=pl.BlockSpec((1, 4, SUBLANES, LANES),
                                   lambda c, i: (c, 0, 0, 0)),
        ),
        compiler_params=pltpu.CompilerParams(
            dimension_semantics=("parallel", "arbitrary")),
    )(x3, t3)

    # Tiny cross-lane / cross-split reduce + scalar epilogue in plain JAX.
    sums = jnp.sum(partial, axis=(0, 2, 3))       # (4,)
    intersection, sum_p, sum_t, bce_sum = sums[0], sums[1], sums[2], sums[3]

    coeff = (2.0 * intersection + smooth) / (sum_p + sum_t + smooth)
    dice_loss = 1.0 - coeff
    bce = bce_sum / n                             # reduction='mean'
    dice_bce = weight * bce + (1.0 - weight) * dice_loss
    return dice_bce, coeff


if __name__ == "__main__":
    key = jax.random.PRNGKey(0)
    k1, k2, k3, k4 = jax.random.split(key, 4)

    def reference(logits, tgts, weight=0.5, smooth=1.0):
        p = jax.nn.sigmoid(logits.astype(jnp.float32)).reshape(-1)
        t = tgts.astype(jnp.float32).reshape(-1)
        inter = jnp.sum(p * t)
        coeff = (2.0 * inter + smooth) / (jnp.sum(p) + jnp.sum(t) + smooth)
        bce = -jnp.mean(t * jnp.log(p) + (1.0 - t) * jnp.log(1.0 - p))
        return weight * bce + (1.0 - weight) * (1.0 - coeff), coeff

    # NCHW, same convention as the PyTorch module.
    logits = jax.random.normal(k1, (2, 4, 16, 16), dtype=jnp.float32)
    targets = (jax.random.uniform(k2, (2, 4, 16, 16)) > 0.5).astype(jnp.float32)

    loss, coeff = jax.block_until_ready(dice_bce_loss(logits, targets))
    loss_ref, coeff_ref = reference(logits, targets)
    assert jnp.allclose(loss, loss_ref, atol=1e-5, rtol=1e-5), (loss, loss_ref)
    assert jnp.allclose(coeff, coeff_ref, atol=1e-5, rtol=1e-5), (coeff, coeff_ref)

    # Odd element count (exercises the in-kernel tail mask) + bf16 logits
    # (exercises the native-dtype DMA path).
    logits2 = jax.random.normal(k3, (2, 3, 10, 10), dtype=jnp.bfloat16)
    targets2 = (jax.random.uniform(k4, (2, 3, 10, 10)) > 0.5).astype(jnp.float32)
    loss2, coeff2 = jax.block_until_ready(dice_bce_loss(logits2, targets2))
    loss2_ref, coeff2_ref = reference(logits2, targets2)
    assert jnp.allclose(loss2, loss2_ref, atol=1e-4, rtol=1e-4), (loss2, loss2_ref)
    assert jnp.allclose(coeff2, coeff2_ref, atol=1e-4, rtol=1e-4), (coeff2, coeff2_ref)

    print("KERNEL_OK")
</pallas_src>

<mosaic_0001>
module attributes {stable_mosaic.version = 11 : i64} {
  func.func @_dice_bce_kernel(%arg0: i32, %arg1: i32, %arg2: memref<2x8x128xf32, #tpu.memory_space<vmem>>, %arg3: memref<2x8x128xf32, #tpu.memory_space<vmem>>, %arg4: memref<1x4x8x128xf32, #tpu.memory_space<vmem>>) attributes {dimension_semantics = [#tpu.dimension_semantics<parallel>, #tpu.dimension_semantics<arbitrary>], iteration_bounds = array<i64: 2, 1>, scalar_prefetch = 0 : i64, scratch_operands = 0 : i64, tpu.core_type = #tpu.core_type<tc>, window_params = [{transform_indices = @transform_0, window_bounds = array<i64: 2, 8, 128>}, {transform_indices = @transform_1, window_bounds = array<i64: 2, 8, 128>}, {transform_indices = @transform_2, window_bounds = array<i64: 1, 4, 8, 128>}]} {
    %c0_i32 = arith.constant 0 : i32
    %0 = arith.cmpi eq, %arg1, %c0_i32 : i32
    %1 = arith.extui %0 : i1 to i32
    %c0_i32_0 = arith.constant 0 : i32
    %2 = arith.cmpi ne, %1, %c0_i32_0 : i32
    scf.if %2 {
      %cst_45 = arith.constant 0.000000e+00 : f32
      %72 = vector.broadcast %cst_45 : f32 to vector<1x4x8x128xf32>
      %c0_46 = arith.constant 0 : index
      %c0_47 = arith.constant 0 : index
      %c0_48 = arith.constant 0 : index
      %c0_49 = arith.constant 0 : index
      %73 = vector.load %arg4[%c0_46, %c0_47, %c0_48, %c0_49] : memref<1x4x8x128xf32, #tpu.memory_space<vmem>>, vector<1x4x8x128xf32>
      tpu.vector_store %arg4[%c0_46, %c0_47, %c0_48, %c0_49], %72 {strides = array<i32>} : memref<1x4x8x128xf32, #tpu.memory_space<vmem>>, vector<1x4x8x128xf32>,
    } else {
    }
    %c0 = arith.constant 0 : index
    %c0_1 = arith.constant 0 : index
    %c0_2 = arith.constant 0 : index
    %3 = vector.load %arg2[%c0, %c0_1, %c0_2] : memref<2x8x128xf32, #tpu.memory_space<vmem>>, vector<2x8x128xf32>
    %c0_3 = arith.constant 0 : index
    %c0_4 = arith.constant 0 : index
    %c0_5 = arith.constant 0 : index
    %4 = vector.load %arg3[%c0_3, %c0_4, %c0_5] : memref<2x8x128xf32, #tpu.memory_space<vmem>>, vector<2x8x128xf32>
    %5 = math.absf %3 : vector<2x8x128xf32>
    %cst = arith.constant 0.000000e+00 : f32
    %6 = vector.broadcast %cst : f32 to vector<2x8x128xf32>
    %7 = arith.subf %6, %5 : vector<2x8x128xf32>
    %8 = math.exp %7 : vector<2x8x128xf32>
    %cst_6 = arith.constant 1.000000e+00 : f32
    %9 = vector.broadcast %cst_6 : f32 to vector<2x8x128xf32>
    %10 = arith.addf %9, %8 : vector<2x8x128xf32>
    %cst_7 = arith.constant 1.000000e+00 : f32
    %11 = vector.broadcast %cst_7 : f32 to vector<2x8x128xf32>
    %12 = arith.divf %11, %10 : vector<2x8x128xf32>
    %cst_8 = arith.constant 0.000000e+00 : f32
    %13 = vector.broadcast %cst_8 : f32 to vector<2x8x128xf32>
    %14 = arith.cmpf oge, %3, %13 : vector<2x8x128xf32>
    %15 = arith.mulf %8, %12 : vector<2x8x128xf32>
    %16 = arith.select %14, %12, %15 : vector<2x8x128xi1>, vector<2x8x128xf32>
    %cst_9 = arith.constant 0.000000e+00 : f32
    %17 = vector.broadcast %cst_9 : f32 to vector<2x8x128xf32>
    %18 = arith.maximumf %3, %17 : vector<2x8x128xf32>
    %19 = math.log1p %8 : vector<2x8x128xf32>
    %20 = arith.addf %18, %19 : vector<2x8x128xf32>
    %21 = arith.mulf %4, %3 : vector<2x8x128xf32>
    %22 = arith.subf %20, %21 : vector<2x8x128xf32>
    %c1_i32 = arith.constant 1 : i32
    %23 = arith.muli %arg0, %c1_i32 : i32
    %24 = arith.addi %23, %arg1 : i32
    %c2048_i32 = arith.constant 2048 : i32
    %25 = arith.muli %24, %c2048_i32 : i32
    %26 = tpu.iota {dimensions = array<i32: 0>} : vector<2x8x128xi32>
    %27 = tpu.iota {dimensions = array<i32: 1>} : vector<2x8x128xi32>
    %28 = tpu.iota {dimensions = array<i32: 2>} : vector<2x8x128xi32>
    %c8_i32 = arith.constant 8 : i32
    %29 = vector.broadcast %c8_i32 : i32 to vector<2x8x128xi32>
    %30 = arith.muli %26, %29 : vector<2x8x128xi32>
    %31 = arith.addi %30, %27 : vector<2x8x128xi32>
    %c128_i32 = arith.constant 128 : i32
    %32 = vector.broadcast %c128_i32 : i32 to vector<2x8x128xi32>
    %33 = arith.muli %31, %32 : vector<2x8x128xi32>
    %34 = vector.broadcast %25 : i32 to vector<2x8x128xi32>
    %35 = arith.addi %34, %33 : vector<2x8x128xi32>
    %36 = arith.addi %35, %28 : vector<2x8x128xi32>
    %c2048_i32_10 = arith.constant 2048 : i32
    %37 = vector.broadcast %c2048_i32_10 : i32 to vector<2x8x128xi32>
    %38 = arith.cmpi slt, %36, %37 : vector<2x8x128xi32>
    %cst_11 = arith.constant 0.000000e+00 : f32
    %39 = vector.broadcast %cst_11 : f32 to vector<2x8x128xf32>
    %40 = arith.select %38, %4, %39 : vector<2x8x128xi1>, vector<2x8x128xf32>
    %41 = arith.select %38, %16, %39 : vector<2x8x128xi1>, vector<2x8x128xf32>
    %42 = arith.select %38, %22, %39 : vector<2x8x128xi1>, vector<2x8x128xf32>
    %c0_12 = arith.constant 0 : index
    %c0_13 = arith.constant 0 : index
    %c0_14 = arith.constant 0 : index
    %c0_15 = arith.constant 0 : index
    %43 = vector.load %arg4[%c0_12, %c0_13, %c0_14, %c0_15] : memref<1x4x8x128xf32, #tpu.memory_space<vmem>>, vector<1x1x8x128xf32>
    %44 = vector.shape_cast %43 : vector<1x1x8x128xf32> to vector<8x128xf32>
    %45 = arith.mulf %41, %40 : vector<2x8x128xf32>
    %cst_16 = arith.constant dense<0.000000e+00> : vector<8x128xf32>
    %46 = vector.multi_reduction <add>, %45, %cst_16 [0] : vector<2x8x128xf32> to vector<8x128xf32>
    %47 = arith.addf %44, %46 : vector<8x128xf32>
    %c0_17 = arith.constant 0 : index
    %c0_18 = arith.constant 0 : index
    %c0_19 = arith.constant 0 : index
    %c0_20 = arith.constant 0 : index
    %48 = vector.load %arg4[%c0_17, %c0_18, %c0_19, %c0_20] : memref<1x4x8x128xf32, #tpu.memory_space<vmem>>, vector<1x1x8x128xf32>
    %49 = vector.shape_cast %48 : vector<1x1x8x128xf32> to vector<8x128xf32>
    %50 = vector.shape_cast %47 : vector<8x128xf32> to vector<1x1x8x128xf32>
    tpu.vector_store %arg4[%c0_17, %c0_18, %c0_19, %c0_20], %50 {strides = array<i32>} : memref<1x4x8x128xf32, #tpu.memory_space<vmem>>, vector<1x1x8x128xf32>,
    %c0_21 = arith.constant 0 : index
    %c1 = arith.constant 1 : index
    %c0_22 = arith.constant 0 : index
    %c0_23 = arith.constant 0 : index
    %51 = vector.load %arg4[%c0_21, %c1, %c0_22, %c0_23] : memref<1x4x8x128xf32, #tpu.memory_space<vmem>>, vector<1x1x8x128xf32>
    %52 = vector.shape_cast %51 : vector<1x1x8x128xf32> to vector<8x128xf32>
    %cst_24 = arith.constant dense<0.000000e+00> : vector<8x128xf32>
    %53 = vector.multi_reduction <add>, %41, %cst_24 [0] : vector<2x8x128xf32> to vector<8x128xf32>
    %54 = arith.addf %52, %53 : vector<8x128xf32>
    %c0_25 = arith.constant 0 : index
    %c1_26 = arith.constant 1 : index
    %c0_27 = arith.constant 0 : index
    %c0_28 = arith.constant 0 : index
    %55 = vector.load %arg4[%c0_25, %c1_26, %c0_27, %c0_28] : memref<1x4x8x128xf32, #tpu.memory_space<vmem>>, vector<1x1x8x128xf32>
    %56 = vector.shape_cast %55 : vector<1x1x8x128xf32> to vector<8x128xf32>
    %57 = vector.shape_cast %54 : vector<8x128xf32> to vector<1x1x8x128xf32>
    tpu.vector_store %arg4[%c0_25, %c1_26, %c0_27, %c0_28], %57 {strides = array<i32>} : memref<1x4x8x128xf32, #tpu.memory_space<vmem>>, vector<1x1x8x128xf32>,
    %c0_29 = arith.constant 0 : index
    %c2 = arith.constant 2 : index
    %c0_30 = arith.constant 0 : index
    %c0_31 = arith.constant 0 : index
    %58 = vector.load %arg4[%c0_29, %c2, %c0_30, %c0_31] : memref<1x4x8x128xf32, #tpu.memory_space<vmem>>, vector<1x1x8x128xf32>
    %59 = vector.shape_cast %58 : vector<1x1x8x128xf32> to vector<8x128xf32>
    %cst_32 = arith.constant dense<0.000000e+00> : vector<8x128xf32>
    %60 = vector.multi_reduction <add>, %40, %cst_32 [0] : vector<2x8x128xf32> to vector<8x128xf32>
    %61 = arith.addf %59, %60 : vector<8x128xf32>
    %c0_33 = arith.constant 0 : index
    %c2_34 = arith.constant 2 : index
    %c0_35 = arith.constant 0 : index
    %c0_36 = arith.constant 0 : index
    %62 = vector.load %arg4[%c0_33, %c2_34, %c0_35, %c0_36] : memref<1x4x8x128xf32, #tpu.memory_space<vmem>>, vector<1x1x8x128xf32>
    %63 = vector.shape_cast %62 : vector<1x1x8x128xf32> to vector<8x128xf32>
    %64 = vector.shape_cast %61 : vector<8x128xf32> to vector<1x1x8x128xf32>
    tpu.vector_store %arg4[%c0_33, %c2_34, %c0_35, %c0_36], %64 {strides = array<i32>} : memref<1x4x8x128xf32, #tpu.memory_space<vmem>>, vector<1x1x8x128xf32>,
    %c0_37 = arith.constant 0 : index
    %c3 = arith.constant 3 : index
    %c0_38 = arith.constant 0 : index
    %c0_39 = arith.constant 0 : index
    %65 = vector.load %arg4[%c0_37, %c3, %c0_38, %c0_39] : memref<1x4x8x128xf32, #tpu.memory_space<vmem>>, vector<1x1x8x128xf32>
    %66 = vector.shape_cast %65 : vector<1x1x8x128xf32> to vector<8x128xf32>
    %cst_40 = arith.constant dense<0.000000e+00> : vector<8x128xf32>
    %67 = vector.multi_reduction <add>, %42, %cst_40 [0] : vector<2x8x128xf32> to vector<8x128xf32>
    %68 = arith.addf %66, %67 : vector<8x128xf32>
    %c0_41 = arith.constant 0 : index
    %c3_42 = arith.constant 3 : index
    %c0_43 = arith.constant 0 : index
    %c0_44 = arith.constant 0 : index
    %69 = vector.load %arg4[%c0_41, %c3_42, %c0_43, %c0_44] : memref<1x4x8x128xf32, #tpu.memory_space<vmem>>, vector<1x1x8x128xf32>
    %70 = vector.shape_cast %69 : vector<1x1x8x128xf32> to vector<8x128xf32>
    %71 = vector.shape_cast %68 : vector<8x128xf32> to vector<1x1x8x128xf32>
    tpu.vector_store %arg4[%c0_41, %c3_42, %c0_43, %c0_44], %71 {strides = array<i32>} : memref<1x4x8x128xf32, #tpu.memory_space<vmem>>, vector<1x1x8x128xf32>,
    return
  }
  func.func @transform_0(%arg0: i32, %arg1: i32) -> (i32, i32, i32) {
    %c1_i32 = arith.constant 1 : i32
    %0 = arith.muli %arg0, %c1_i32 : i32
    %1 = arith.addi %0, %arg1 : i32
    %c0_i32 = arith.constant 0 : i32
    %2 = arith.minsi %1, %c0_i32 : i32
    %c0_i32_0 = arith.constant 0 : i32
    %c0_i32_1 = arith.constant 0 : i32
    %c0_i32_2 = arith.constant 0 : i32
    return %2, %c0_i32_0, %c0_i32_1 : i32, i32, i32
  }
  func.func @transform_1(%arg0: i32, %arg1: i32) -> (i32, i32, i32) {
    %c1_i32 = arith.constant 1 : i32
    %0 = arith.muli %arg0, %c1_i32 : i32
    %1 = arith.addi %0, %arg1 : i32
    %c0_i32 = arith.constant 0 : i32
    %2 = arith.minsi %1, %c0_i32 : i32
    %c0_i32_0 = arith.constant 0 : i32
    %c0_i32_1 = arith.constant 0 : i32
    %c0_i32_2 = arith.constant 0 : i32
    return %2, %c0_i32_0, %c0_i32_1 : i32, i32, i32
  }
  func.func @transform_2(%arg0: i32, %arg1: i32) -> (i32, i32, i32, i32) {
    %c0_i32 = arith.constant 0 : i32
    %c0_i32_0 = arith.constant 0 : i32
    %c0_i32_1 = arith.constant 0 : i32
    %c0_i32_2 = arith.constant 0 : i32
    return %arg0, %c0_i32, %c0_i32_0, %c0_i32_1 : i32, i32, i32, i32
  }
}

</mosaic_0001>

<llo_original>
// kernel: tpu_custom_call.1
$region0: #{tpu_custom_call.1}
  #allocation0 [shape = 'u32[]', space=smem, size = 0x4, offset = 0x4, fixed_abs, tag = 'smem constant byte address 0x4 - core index']
  #allocation1 [shape = 'u32[144,128]{1,0:T(1,128)}', space=vmem, size = 0x12000, scoped, tag = 'internal scratch']
  %s0 = inlined_call_operand.hbm [shape: f32[2,8,128], index: 0, kind: input, shape index: {}]
  %s1 = inlined_call_operand.hbm [shape: f32[2,8,128], index: 1, kind: input, shape index: {}]
  %s2 = inlined_call_operand.hbm [shape: f32[2,4,8,128], index: 2, kind: output, shape index: {}]
  %s3 = sld [smem:[#allocation0]]
  $region53: #{tpu_custom_call.1} parent=0
    _
  %s5 = ssub.s32 1, %s3
  %s6 = scalar_select 0, %s5, %s3
  $region1: #{tpu_custom_call.1} parent=0
    #allocation2 [shape = 'u8[16384]{0}', space=vmem, size = 0x4000, scoped, tag = 'input window, operand 0']
    #allocation3 [shape = 's32[2]{0}', space=sflag, size = 0x8, scoped, tag = 'scoped memory for tpu_custom_call.1']
    #allocation4 [shape = 's32[2]{0}', space=sflag, size = 0x8, scoped, tag = 'scoped memory for tpu_custom_call.1']
    #allocation5 [shape = 'u8[16384]{0}', space=vmem, size = 0x4000, scoped, tag = 'input window, operand 1']
    #allocation6 [shape = 's32[2]{0}', space=sflag, size = 0x8, scoped, tag = 'scoped memory for tpu_custom_call.1']
    #allocation7 [shape = 'u8[32768]{0}', space=vmem, size = 0x8000, scoped, tag = 'output window, operand 0']
    %7 = vsyncpa [#allocation3], 0
    %s8 = scalar_lea.sflag [#allocation3], 1
    %9 = vsyncpa %s8, 0
    %10 = vsyncpa [#allocation6], 0
    %s11 = scalar_lea.sflag [#allocation6], 1
    %12 = vsyncpa %s11, 0
    %13 = vsyncpa [#allocation4], 0
    %s14 = scalar_lea.sflag [#allocation4], 1
    %15 = vsyncpa %s14, 0
    loop: start=0, step=1, limit=4
    $region2: #{tpu_custom_call.1} parent=1 // loop_pre_header
      _
    $region3: #{tpu_custom_call.1} parent=1 // loop_header
      %s17 = sphi 0, %s21
      %p18 = scmp.ge.s32.totalorder %s17, 4
      %s24 = sphi 0, %s36
      %s25 = sphi 0, %s32
      %s26 = sphi 0, %s24
      %s27 = sphi 0, %s25
      %s28 = sphi 0, %s26
      %s29 = sphi 0, %s27
      %s45 = sphi 0, %s47
      %s48 = sphi 0, %s45
      %s49 = sphi 0, %s48
      %s65 = sphi 0, %s49
      %s77 = sphi 0, %s79
      %s80 = sphi 0, %s77
      %s81 = sphi 0, %s80
      %s97 = sphi 0, %s81
      %s103 = sphi 0, %s105
      %s106 = sphi 0, %s103
      %s107 = sphi 0, %s106
      %s123 = sphi 0, %s107
    $region4: #{tpu_custom_call.1} parent=1 // loop_header_branch
      %20 = sbr.rel (%p18) target = $region8
    $region5: #{tpu_custom_call.1} parent=1 // loop_body
      %s22 = ssub.s32 %s17, 1
      %s23 = ssub.s32 %s17, 2
      %s30 = sadd.s32 1, %s25
      %p31 = scmp.ge.s32.totalorder %s30, 1
      %s32 = scalar_select %p31, 0, %s30
      %s33 = sadd.s32 1, %s24
      %s34 = scalar_select %p31, %s33, %s24
      %p35 = scmp.ge.s32.totalorder %s34, 2
      %s36 = scalar_select %p35, 0, %s34
      %s37 = sadd.s32 %s24, %s25
      %p38 = scmp.lt.s32.totalorder %s37, 0
      %s39 = scalar_select %p38, %s37, 0
      %s40 = sadd.s32 %s36, %s32
      %p41 = scmp.lt.s32.totalorder %s40, 0
      %s42 = scalar_select %p41, %s40, 0
      %s43 = ssub.s32 %s39, %s42
      %p44 = scmp.eq.s32.totalorder %s43, 0
      %s46 = sadd.s32 %s45, 1
      %s47 = scalar_select %p44, %s45, %s46
      %p50 = pneg %p44
      %p51 = scmp.eq.s32.totalorder %s17, 1
      %p52 = por %p50, %p51
      %p53 = scmp.ne.s32.totalorder %s45, %s48
      %p54 = scmp.eq.s32.totalorder %s17, 0
      %p55 = por %p53, %p54
      %p56 = scmp.ne.s32.totalorder %s45, %s48
      %p57 = scmp.eq.s32.totalorder %s22, 1
      %p58 = por %p56, %p57
      %p59 = scmp.ne.s32.totalorder %s48, %s49
      %p60 = scmp.eq.s32.totalorder %s22, 0
      %p61 = por %p59, %p60
      %p62 = scmp.ne.s32.totalorder %s48, %s49
      %p63 = scmp.eq.s32.totalorder %s23, 1
      %p64 = por %p62, %p63
      %p66 = scmp.ne.s32.totalorder %s49, %s65
      %p67 = scmp.eq.s32.totalorder %s23, 0
      %p68 = por %p66, %p67
      %s69 = sadd.s32 %s24, %s25
      %p70 = scmp.lt.s32.totalorder %s69, 0
      %s71 = scalar_select %p70, %s69, 0
      %s72 = sadd.s32 %s36, %s32
      %p73 = scmp.lt.s32.totalorder %s72, 0
      %s74 = scalar_select %p73, %s72, 0
      %s75 = ssub.s32 %s71, %s74
      %p76 = scmp.eq.s32.totalorder %s75, 0
      %s78 = sadd.s32 %s77, 1
      %s79 = scalar_select %p76, %s77, %s78
      %p82 = pneg %p76
      %p83 = scmp.eq.s32.totalorder %s17, 1
      %p84 = por %p82, %p83
      %p85 = scmp.ne.s32.totalorder %s77, %s80
      %p86 = scmp.eq.s32.totalorder %s17, 0
      %p87 = por %p85, %p86
      %p88 = scmp.ne.s32.totalorder %s77, %s80
      %p89 = scmp.eq.s32.totalorder %s22, 1
      %p90 = por %p88, %p89
      %p91 = scmp.ne.s32.totalorder %s80, %s81
      %p92 = scmp.eq.s32.totalorder %s22, 0
      %p93 = por %p91, %p92
      %p94 = scmp.ne.s32.totalorder %s80, %s81
      %p95 = scmp.eq.s32.totalorder %s23, 1
      %p96 = por %p94, %p95
      %p98 = scmp.ne.s32.totalorder %s81, %s97
      %p99 = scmp.eq.s32.totalorder %s23, 0
      %p100 = por %p98, %p99
      %s101 = ssub.s32 %s24, %s36
      %p102 = scmp.eq.s32.totalorder %s101, 0
      %s104 = sadd.s32 %s103, 1
      %s105 = scalar_select %p102, %s103, %s104
      %p108 = pneg %p102
      %p109 = scmp.eq.s32.totalorder %s17, 1
      %p110 = por %p108, %p109
      %p111 = scmp.ne.s32.totalorder %s103, %s106
      %p112 = scmp.eq.s32.totalorder %s17, 0
      %p113 = por %p111, %p112
      %p114 = scmp.ne.s32.totalorder %s103, %s106
      %p115 = scmp.eq.s32.totalorder %s22, 1
      %p116 = por %p114, %p115
      %p117 = scmp.ne.s32.totalorder %s106, %s107
      %p118 = scmp.eq.s32.totalorder %s22, 0
      %p119 = por %p117, %p118
      %p120 = scmp.ne.s32.totalorder %s106, %s107
      %p121 = scmp.eq.s32.totalorder %s23, 1
      %p122 = por %p120, %p121
      %p124 = scmp.ne.s32.totalorder %s107, %s123
      %p125 = scmp.eq.s32.totalorder %s23, 0
      %p126 = por %p124, %p125
      %p127 = scmp.le.s32.totalorder 1, %s17
      %p128 = scmp.lt.s32.totalorder %s17, 3
      %p129 = pnand %p127, %p128
      %p130 = pneg %p129
      // Predicated region
      $region9: #{tpu_custom_call.1} parent=5 // pred_check
        _
      $region10: #{tpu_custom_call.1} parent=5 // pred_check_branch
        %132 = sbr.rel (%p129) target = $region12
      $region11: #{tpu_custom_call.1} parent=5 // pred_region
        %s133 = ssub.s32 %s17, 1
      $region12: #{tpu_custom_call.1} parent=5 // pred_fallthru
        _
      %p134 = scmp.lt.s32.totalorder %s17, 2
      // Predicated region
      $region13: #{tpu_custom_call.1} parent=5 // pred_check
        %p135 = pneg %p134
      $region14: #{tpu_custom_call.1} parent=5 // pred_check_branch
        %137 = sbr.rel (%p135) target = $region16
      $region15: #{tpu_custom_call.1} parent=5 // pred_region
        // Predicated region
        $region17: #{tpu_custom_call.1} parent=15 // pred_check
          %p138 = pneg %p55
        $region18: #{tpu_custom_call.1} parent=15 // pred_check_branch
          %140 = sbr.rel (%p138) target = $region20
        $region19: #{tpu_custom_call.1} parent=15 // pred_region
          %s141 = sand.u32 %s45, 1
          %s142 = scalar_lea.sflag [#allocation3], %s141
          %s143 = sand.u32 %s45, 1
          %s144 = smul.addr %s143, 16
          %s145 = scalar_lea.vmem [#allocation2], %s144
          %s146 = sadd.s32 %s24, %s25
          %p147 = scmp.lt.s32.totalorder %s146, 0
          %s148 = scalar_select %p147, %s146, 0
          %s149 = smul.u32 2, %s148
          %s151 = ssub.s32 256, 256
          %152 = vsyncadd %s142, %s151
          %s153 = smul.addr %s149, 128
          %s154 = scalar_lea.hbm %s0, %s153
          %s155 = sshll.u32 %s145, 4
          %s156 = int_to_ptr.vmem [resolvable:$true] %s155
          %161 = dma.hbm_to_vmem [thread:$0]  %s154, 256, %s156, %s142, 128, 128, 8
        $region20: #{tpu_custom_call.1} parent=15 // pred_fallthru
          _
        // Predicated region
        $region21: #{tpu_custom_call.1} parent=15 // pred_check
          %p162 = pneg %p87
        $region22: #{tpu_custom_call.1} parent=15 // pred_check_branch
          %164 = sbr.rel (%p162) target = $region24
        $region23: #{tpu_custom_call.1} parent=15 // pred_region
          %s165 = sand.u32 %s77, 1
          %s166 = scalar_lea.sflag [#allocation6], %s165
          %s167 = sand.u32 %s77, 1
          %s168 = smul.addr %s167, 16
          %s169 = scalar_lea.vmem [#allocation5], %s168
          %s170 = sadd.s32 %s24, %s25
          %p171 = scmp.lt.s32.totalorder %s170, 0
          %s172 = scalar_select %p171, %s170, 0
          %s173 = smul.u32 2, %s172
          %s175 = ssub.s32 256, 256
          %176 = vsyncadd %s166, %s175
          %s177 = smul.addr %s173, 128
          %s178 = scalar_lea.hbm %s1, %s177
          %s179 = sshll.u32 %s169, 4
          %s180 = int_to_ptr.vmem [resolvable:$true] %s179
          %185 = dma.hbm_to_vmem [thread:$0]  %s178, 256, %s180, %s166, 128, 128, 8
        $region24: #{tpu_custom_call.1} parent=15 // pred_fallthru
          _
      $region16: #{tpu_custom_call.1} parent=5 // pred_fallthru
        _
      %p186 = scmp.le.s32.totalorder 1, %s17
      %p187 = scmp.lt.s32.totalorder %s17, 3
      %p188 = pnand %p186, %p187
      %p189 = pneg %p188
      // Predicated region
      $region25: #{tpu_custom_call.1} parent=5 // pred_check
        _
      $region26: #{tpu_custom_call.1} parent=5 // pred_check_branch
        %191 = sbr.rel (%p188) target = $region28
      $region27: #{tpu_custom_call.1} parent=5 // pred_region
        %s192 = ssub.s32 %s17, 1
        %s193 = sand.u32 %s48, 1
        %s194 = scalar_lea.sflag [#allocation3], %s193
        %s195 = sand.u32 %s48, 1
        %s196 = smul.addr %s195, 16
        %s197 = scalar_lea.vmem [#allocation2], %s196
        // Predicated region
        $region29: #{tpu_custom_call.1} parent=27 // pred_check
          %p198 = pneg %p61
        $region30: #{tpu_custom_call.1} parent=27 // pred_check_branch
          %200 = sbr.rel (%p198) target = $region32
        $region31: #{tpu_custom_call.1} parent=27 // pred_region
          %201 = dma.done %s194, 256
        $region32: #{tpu_custom_call.1} parent=27 // pred_fallthru
          _
        %s202 = sand.u32 %s80, 1
        %s203 = scalar_lea.sflag [#allocation6], %s202
        %s204 = sand.u32 %s80, 1
        %s205 = smul.addr %s204, 16
        %s206 = scalar_lea.vmem [#allocation5], %s205
        // Predicated region
        $region33: #{tpu_custom_call.1} parent=27 // pred_check
          %p207 = pneg %p93
        $region34: #{tpu_custom_call.1} parent=27 // pred_check_branch
          %209 = sbr.rel (%p207) target = $region36
        $region35: #{tpu_custom_call.1} parent=27 // pred_region
          %210 = dma.done %s203, 256
        $region36: #{tpu_custom_call.1} parent=27 // pred_fallthru
          _
        %s211 = sand.u32 %s48, 1
        %s212 = scalar_lea.sflag [#allocation3], %s211
        %s213 = sand.u32 %s48, 1
        %s214 = smul.addr %s213, 16
        %s215 = scalar_lea.vmem [#allocation2], %s214
        %p216 = pneg %p61
        %p217 = pneg %p58
        %s218 = sand.u32 %s80, 1
        %s219 = scalar_lea.sflag [#allocation6], %s218
        %s220 = sand.u32 %s80, 1
        %s221 = smul.addr %s220, 16
        %s222 = scalar_lea.vmem [#allocation5], %s221
        %p223 = pneg %p93
        %p224 = pneg %p90
        %p225 = pneg %p119
        %p226 = pneg %p116
        %s227 = sand.u32 %s106, 1
        %s228 = scalar_lea.sflag [#allocation4], %s227
        %s229 = sand.u32 %s106, 1
        %s230 = smul.addr %s229, 32
        %s231 = scalar_lea.vmem [#allocation7], %s230
        %s232 = sadd.s32 %s26, %s27
        %p233 = scmp.lt.s32.totalorder %s232, 0
        %s234 = scalar_select %p233, %s232, 0
        %s235 = smul.u32 2, %s234
        %s236 = sadd.s32 %s26, %s27
        %p237 = scmp.lt.s32.totalorder %s236, 0
        %s238 = scalar_select %p237, %s236, 0
        %s239 = smul.u32 2, %s238
        %p240 = scmp.eq.s32.totalorder %s27, 0
        // Predicated region
        $region37: #{tpu_custom_call.1} parent=27 // pred_check
          %p241 = pneg %p240
        $region38: #{tpu_custom_call.1} parent=27 // pred_check_branch
          %243 = sbr.rel (%p241) target = $region40
        $region39: #{tpu_custom_call.1} parent=27 // pred_region
          %244 = vst [vmem:[%s231] sm:$0xff] 0.0
          %245 = vst [vmem:[%s231 + $0x8] sm:$0xff] 0.0
          %246 = vst [vmem:[%s231 + $0x10] sm:$0xff] 0.0
          %247 = vst [vmem:[%s231 + $0x18] sm:$0xff] 0.0
        $region40: #{tpu_custom_call.1} parent=27 // pred_fallthru
          _
        %v248 = vld [vmem:[%s197] sm:$0xff]
        %v249 = vld [vmem:[%s197 + $0x8] sm:$0xff]
        %v250 = vld [vmem:[%s206] sm:$0xff]
        %v251 = vld [vmem:[%s206 + $0x8] sm:$0xff]
        %v252 = vand.u32 2147483647, %v248
        %v253 = vand.u32 2147483647, %v249
        %v254 = vsub.f32 0.0, %v252
        %v255 = vsub.f32 0.0, %v253
        %v256 = vmul.f32 %v254, 1.442695
        %v257 = vpow.pop %v256
        %v258 = vmul.f32 %v255, 1.442695
        %v259 = vpow.pop %v258
        %v260 = vadd.f32 %v257, 1.0
        %v261 = vadd.f32 %v259, 1.0
        %v262 = vrcp.pop %v260
        %v263 = vmul.f32 1.0, %v262
        %v264 = vrcp.pop %v261
        %v265 = vmul.f32 1.0, %v264
        %vm266 = vcmp.ge.f32.partialorder %v248, 0.0
        %vm267 = vcmp.ge.f32.partialorder %v249, 0.0
        %v268 = vmul.f32 %v257, %v263
        %v269 = vmul.f32 %v259, %v265
        %v270 = vsel %vm266, %v263, %v268
        %v271 = vsel %vm267, %v265, %v269
        %v272 = vmax.f32 %v248, 0.0
        %v273 = vmax.f32 %v249, 0.0
        %v274 = vadd.f32 %v257, 1.0
        %v275 = vlog2.pop %v274
        %v276 = vmul.f32 %v275, 0.6931472
        %v277 = vmul.f32 -0.5, %v257
        %v278 = vadd.f32 %v277, 1.0
        %v279 = vmul.f32 %v278, %v257
        %v280 = vand.u32 2147483647, %v257
        %vm281 = vcmp.lt.f32.partialorder %v280, 0.0004427343
        %v282 = vsel %vm281, %v279, %v276
        %v283 = vadd.f32 %v259, 1.0
        %v284 = vlog2.pop %v283
        %v285 = vmul.f32 %v284, 0.6931472
        %v286 = vmul.f32 -0.5, %v259
        %v287 = vadd.f32 %v286, 1.0
        %v288 = vmul.f32 %v287, %v259
        %v289 = vand.u32 2147483647, %v259
        %vm290 = vcmp.lt.f32.partialorder %v289, 0.0004427343
        %v291 = vsel %vm290, %v288, %v285
        %v292 = vadd.f32 %v272, %v282
        %v293 = vadd.f32 %v273, %v291
        %v294 = vmul.f32 %v250, %v248
        %v295 = vmul.f32 %v251, %v249
        %v296 = vsub.f32 %v292, %v294
        %v297 = vsub.f32 %v293, %v295
        %s298 = sadd.s32 %s26, %s27
        %s299 = smul.u32 %s298, 2048
        %v300 = vlaneseq
        %v301 = vshrl.u32 %v300, 7
        %v302 = vlaneseq
        %v303 = vand.u32 %v302, 127
        %v304 = vadd.s32 %v301, 8
        %v305 = vmul.u32 %v301, 128
        %v306 = vmul.u32 %v304, 128
        %v307 = vstv %s299
        %v308 = vadd.s32 %v307, %v305
        %v309 = vadd.s32 %v307, %v306
        %v310 = vadd.s32 %v308, %v303
        %v311 = vadd.s32 %v309, %v303
        %vm312 = vcmp.lt.s32.totalorder %v310, 2048
        %vm313 = vcmp.lt.s32.totalorder %v311, 2048
        %v314 = vsel %vm312, %v250, 0.0
        %v315 = vsel %vm313, %v251, 0.0
        %v316 = vsel %vm312, %v270, 0.0
        %v317 = vsel %vm313, %v271, 0.0
        %v318 = vsel %vm312, %v296, 0.0
        %v319 = vsel %vm313, %v297, 0.0
        %v320 = vld [vmem:[%s231] sm:$0xff]
        %v321 = vmul.f32 %v316, %v314
        %v322 = vmul.f32 %v317, %v315
        %v323 = vadd.f32 %v321, %v322
        %v324 = vadd.f32 %v320, %v323
        %325 = vst [vmem:[%s231] sm:$0xff] %v324
        %s326 = scalar_lea.vmem %s231, 8 [#allocation7]
        %v327 = vld [vmem:[%s326] sm:$0xff]
        %v328 = vadd.f32 %v316, %v317
        %v329 = vadd.f32 %v327, %v328
        %330 = vst [vmem:[%s326] sm:$0xff] %v329
        %s331 = scalar_lea.vmem %s231, 16 [#allocation7]
        %v332 = vld [vmem:[%s331] sm:$0xff]
        %v333 = vadd.f32 %v314, %v315
        %v334 = vadd.f32 %v332, %v333
        %335 = vst [vmem:[%s331] sm:$0xff] %v334
        %s336 = scalar_lea.vmem %s231, 24 [#allocation7]
        %v337 = vld [vmem:[%s336] sm:$0xff]
        %v338 = vadd.f32 %v318, %v319
        %v339 = vadd.f32 %v337, %v338
        %340 = vst [vmem:[%s336] sm:$0xff] %v339
        %s341 = sand.u32 %s106, 1
        %s342 = scalar_lea.sflag [#allocation4], %s341
        %s343 = sand.u32 %s106, 1
        %s344 = smul.addr %s343, 32
        %s345 = scalar_lea.vmem [#allocation7], %s344
        // Predicated region
        $region41: #{tpu_custom_call.1} parent=27 // pred_check
          %p346 = pneg %p116
        $region42: #{tpu_custom_call.1} parent=27 // pred_check_branch
          %348 = sbr.rel (%p346) target = $region44
        $region43: #{tpu_custom_call.1} parent=27 // pred_region
          %s350 = ssub.s32 512, 512
          %351 = vsyncadd %s342, %s350
          %s352 = smul.addr %s26, 4
          %s353 = smul.addr %s352, 128
          %s354 = scalar_lea.hbm %s2, %s353
          %s355 = sshll.u32 %s345, 4
          %s356 = int_to_ptr.vmem [resolvable:$true] %s355
          %361 = dma.vmem_to_hbm [thread:$0]  %s356, 512, %s354, %s342, 128, 128, 8
        $region44: #{tpu_custom_call.1} parent=27 // pred_fallthru
          _
      $region28: #{tpu_custom_call.1} parent=5 // pred_fallthru
        _
      %p362 = scmp.le.s32.totalorder 2, %s17
      // Predicated region
      $region45: #{tpu_custom_call.1} parent=5 // pred_check
        %p363 = pneg %p362
      $region46: #{tpu_custom_call.1} parent=5 // pred_check_branch
        %365 = sbr.rel (%p363) target = $region48
      $region47: #{tpu_custom_call.1} parent=5 // pred_region
        %s366 = ssub.s32 %s17, 2
        // Predicated region
        $region49: #{tpu_custom_call.1} parent=47 // pred_check
          %p367 = pneg %p122
        $region50: #{tpu_custom_call.1} parent=47 // pred_check_branch
          %369 = sbr.rel (%p367) target = $region52
        $region51: #{tpu_custom_call.1} parent=47 // pred_region
          %s370 = sand.u32 %s107, 1
          %s371 = scalar_lea.sflag [#allocation4], %s370
          %s372 = sand.u32 %s107, 1
          %s373 = smul.addr %s372, 32
          %s374 = scalar_lea.vmem [#allocation7], %s373
          %375 = dma.done %s371, 512
        $region52: #{tpu_custom_call.1} parent=47 // pred_fallthru
          _
      $region48: #{tpu_custom_call.1} parent=5 // pred_fallthru
        _
    $region6: #{tpu_custom_call.1} parent=1 // loop_footer
      %s21 = sadd.s32 1, %s17
    $region7: #{tpu_custom_call.1} parent=1 // loop_footer_branch
      %16 = sbr.rel target = $region3
    $region8: #{tpu_custom_call.1} parent=1 // loop_exit
      _
    %376 = vsyncpa [#allocation3], 1
    %s377 = scalar_lea.sflag [#allocation3], 1
    %378 = vsyncpa %s377, 1
    %379 = vsyncpa [#allocation6], 1
    %s380 = scalar_lea.sflag [#allocation6], 1
    %381 = vsyncpa %s380, 1
    %382 = vsyncpa [#allocation4], 1
    %s383 = scalar_lea.sflag [#allocation4], 1
    %384 = vsyncpa %s383, 1

</llo_original>
